<compile_context>
chip_gen: v7x
topology: tpu7x:2x2x1
jax: 0.10.0
libtpu: 0.0.40
codegen_flags: <defaults>
</compile_context>

<pallas_src>
import functools

import jax
import jax.numpy as jnp
from jax.experimental import pallas as pl
from jax.experimental.pallas import tpu as pltpu


def _round_up(x, m):
    return ((x + m - 1) // m) * m


# ------------------------------ Pallas kernels ------------------------------ #
def _epilogue(acc, scale, shift, use_bn, act):
    """Fused per-channel scale/shift (+bias) and activation on an f32 tile."""
    if use_bn:
        acc = acc * scale + shift          # conv bias folded into shift
    else:
        acc = acc + shift                  # shift == conv bias
    if act == "relu":
        acc = jnp.maximum(acc, 0.0)
    elif act == "silu":
        acc = acc * (1.0 / (1.0 + jnp.exp(-acc)))   # exp -> EUP slot
    elif act is not None:
        raise ValueError(f"unsupported activation: {act}")
    return acc


def _gemm_epilogue_kernel(a_ref, w_ref, scale_ref, shift_ref, o_ref, *, use_bn, act):
    """Single-K-tile path: one MXU dot + fused epilogue, no accumulator."""
    acc = jnp.dot(a_ref[...], w_ref[...], preferred_element_type=jnp.float32)
    o_ref[...] = _epilogue(acc, scale_ref[...], shift_ref[...],
                           use_bn, act).astype(o_ref.dtype)


def _gemm_epilogue_kernel_ksplit(a_ref, w_ref, scale_ref, shift_ref, o_ref, *, use_bn, act):
    """K-split path: accumulate directly into the resident f32 output block."""
    k = pl.program_id(2)
    partial = jnp.dot(a_ref[...], w_ref[...], preferred_element_type=jnp.float32)

    @pl.when(k == 0)
    def _():
        o_ref[...] = partial               # no zero-fill + read-modify-write

    @pl.when(k > 0)
    def _():
        o_ref[...] += partial

    @pl.when(k == pl.num_programs(2) - 1)
    def _():
        o_ref[...] = _epilogue(o_ref[...], scale_ref[...], shift_ref[...],
                               use_bn, act).astype(o_ref.dtype)


# -------------------------------- glue (JAX) -------------------------------- #
def _im2col_nchw(x, kh, kw, stride, pad_h, pad_w):
    """x: (N, Cin, H, W) -> patches (N*OH*OW, Cin*KH*KW), feature order (Cin, KH, KW)."""
    n, cin, h, w = x.shape
    xp = jnp.pad(x, ((0, 0), (0, 0), (pad_h, pad_h), (pad_w, pad_w)))
    oh = (h + 2 * pad_h - kh) // stride + 1
    ow = (w + 2 * pad_w - kw) // stride + 1
    cols = []
    for i in range(kh):
        for j in range(kw):
            cols.append(xp[:, :, i:i + stride * oh:stride, j:j + stride * ow:stride])
    # (N, Cin, KH*KW, OH, OW) -> flatten (Cin, KH, KW) contiguously to match
    # weight.reshape(Cout, Cin*KH*KW) from a (Cout, Cin, KH, KW) PyTorch weight.
    patches = jnp.stack(cols, axis=2).reshape(n, cin * kh * kw, oh, ow)
    patches = patches.transpose(0, 2, 3, 1).reshape(n * oh * ow, cin * kh * kw)
    return patches, oh, ow


def base_conv_forward(x, weight, bias,
                      bn_gamma=None, bn_beta=None, bn_mean=None, bn_var=None,
                      *, stride=1, use_bn=False, activation=None, eps=1e-5,
                      tm=1024, tn=256, tk=512,
                      compute_dtype=jnp.bfloat16, out_layout="NCHW"):
    """Forward of BaseConv (inference).

    x: (N, Cin, H, W) f32, weight: (Cout, Cin, KH, KW) f32, bias: (Cout,) f32.
    compute_dtype: MXU operand dtype (bf16 default; f32 for bit-exact parity).
    The accumulation is always f32 inside the kernel.
    """
    n, cin, h, w = x.shape
    cout, wcin, kh, kw = weight.shape
    if wcin != cin:
        # TODO(synk): groups != 1 (depthwise) not supported by the GEMM formulation.
        raise NotImplementedError("grouped convolution is not supported")
    pad_h, pad_w = kh // 2, kw // 2        # matches nn.Conv2d(..., padding=kernel // 2)

    # --- cast BEFORE im2col so the materialized patches array is bf16 -------
    x_c = x.astype(compute_dtype)
    w_c = weight.astype(compute_dtype)
    in_bytes = jnp.dtype(compute_dtype).itemsize

    patches, oh, ow = _im2col_nchw(x_c, kh, kw, stride, pad_h, pad_w)   # (M, K)
    m, k = patches.shape

    # --- tile / padding selection -------------------------------------------
    tn = max(128, _round_up(tn, 128))
    n_pad = _round_up(cout, 128)           # lane-dense output (>=128 multiple)
    tn = min(tn, n_pad)
    if n_pad % tn != 0:
        n_pad = _round_up(n_pad, tn)

    tk = max(128, _round_up(tk, 128))
    k_min = _round_up(k, 128)
    single_k = k_min <= tk                 # typical conv: K = Cin*KH*KW is small
    if single_k:
        tk = k_pad = k_min
    else:
        k_pad = _round_up(k, tk)

    tm = max(8, _round_up(tm, 8))
    tm = min(tm, _round_up(m, 8))
    # Guarantee >= 2 grid steps along the parallel axes so both v7x
    # TensorCores get work on small problems.
    if (n_pad // tn) * (_round_up(m, tm) // tm) < 2 and m > 8:
        tm = max(8, _round_up((m + 1) // 2, 8))

    # Explicit VMEM budget (v7x has only 64 MiB physical VMEM): shrink tm if
    # the double-buffered tiles would not fit.
    def _vmem_est(tm_):
        return (2 * (tm_ * tk + tk * tn) * in_bytes   # double-buffered A, W tiles
                + 2 * 2 * tn * 4                      # scale / shift
                + 2 * tm_ * tn * 4)                   # double-buffered f32 out (accumulator)
    vmem_budget = 40 * 1024 * 1024
    while _vmem_est(tm) > vmem_budget and tm > 8:
        tm = max(8, _round_up(tm // 2, 8))
    m_pad = _round_up(m, tm)

    patches = jnp.pad(patches, ((0, m_pad - m), (0, k_pad - k)))
    w_flat = w_c.reshape(cout, cin * kh * kw).T                         # (K, Cout)
    w_flat = jnp.pad(w_flat, ((0, k_pad - k), (0, n_pad - cout)))

    # --- fold bias (and inference-mode BN) into per-channel scale/shift -----
    # TODO(synk): training-mode BatchNorm (batch statistics over N,H,W) not implemented.
    bias = bias.astype(jnp.float32)
    if use_bn:
        inv_std = 1.0 / jnp.sqrt(bn_var.astype(jnp.float32) + eps)
        scale = bn_gamma.astype(jnp.float32) * inv_std
        shift = (bias - bn_mean.astype(jnp.float32)) * scale + bn_beta.astype(jnp.float32)
    else:
        scale = jnp.ones((cout,), jnp.float32)
        shift = bias
    scale = jnp.pad(scale, (0, n_pad - cout)).reshape(1, n_pad)
    shift = jnp.pad(shift, (0, n_pad - cout)).reshape(1, n_pad)

    vmem_limit = min(max(int(_vmem_est(tm) * 1.5), 16 * 1024 * 1024), 64 * 1024 * 1024)

    cost = pl.CostEstimate(
        flops=2 * m_pad * k_pad * n_pad,
        transcendentals=(m_pad * n_pad if activation == "silu" else 0),
        bytes_accessed=(m_pad * k_pad * in_bytes * (n_pad // tn)    # A re-read per N tile
                        + k_pad * n_pad * in_bytes * (m_pad // tm)  # W re-read per M tile
                        + m_pad * n_pad * 4                         # output write
                        + 2 * n_pad * 4),
    )

    if single_k:
        kernel = functools.partial(_gemm_epilogue_kernel, use_bn=use_bn, act=activation)
        grid = (m_pad // tm, n_pad // tn)
        in_specs = [
            pl.BlockSpec((tm, k_pad), lambda i, j: (i, 0)),
            pl.BlockSpec((k_pad, tn), lambda i, j: (0, j)),
            pl.BlockSpec((1, tn), lambda i, j: (0, j)),
            pl.BlockSpec((1, tn), lambda i, j: (0, j)),
        ]
        out_specs = pl.BlockSpec((tm, tn), lambda i, j: (i, j))
        dims = ("parallel", "parallel")
    else:
        kernel = functools.partial(_gemm_epilogue_kernel_ksplit, use_bn=use_bn, act=activation)
        grid = (m_pad // tm, n_pad // tn, k_pad // tk)
        in_specs = [
            pl.BlockSpec((tm, tk), lambda i, j, kk: (i, kk)),
            pl.BlockSpec((tk, tn), lambda i, j, kk: (kk, j)),
            pl.BlockSpec((1, tn), lambda i, j, kk: (0, j)),
            pl.BlockSpec((1, tn), lambda i, j, kk: (0, j)),
        ]
        out_specs = pl.BlockSpec((tm, tn), lambda i, j, kk: (i, j))
        dims = ("parallel", "parallel", "arbitrary")

    out_flat = pl.pallas_call(
        kernel,
        out_shape=jax.ShapeDtypeStruct((m_pad, n_pad), jnp.float32),
        grid_spec=pltpu.PrefetchScalarGridSpec(
            num_scalar_prefetch=0,
            grid=grid,
            in_specs=in_specs,
            out_specs=out_specs,
        ),
        compiler_params=pltpu.CompilerParams(
            dimension_semantics=dims,
            vmem_limit_bytes=vmem_limit,
        ),
        cost_estimate=cost,
    )(patches, w_flat, scale, shift)

    out_flat = out_flat[:m, :cout]                 # drop M / Cout padding
    out_nhwc = out_flat.reshape(n, oh, ow, cout)
    if out_layout == "NHWC":
        return out_nhwc                            # skip the full-output transpose
    return out_nhwc.transpose(0, 3, 1, 2)          # (N, Cout, OH, OW)


# ----------------------------------- main ----------------------------------- #
if __name__ == "__main__":
    key = jax.random.PRNGKey(0)
    k1, k2, k3, k4 = jax.random.split(key, 4)

    def conv_ref(x, weight, bias, stride, pad):
        r = jax.lax.conv_general_dilated(
            x, weight, window_strides=(stride, stride),
            padding=((pad, pad), (pad, pad)),
            dimension_numbers=("NCHW", "OIHW", "NCHW"))
        return r + bias.reshape(1, -1, 1, 1)

    # --- test 1: BaseConv(4 -> 8, k=3, relu, use_bn=True), f32 exact --------
    N, Cin, H, W, Cout, K, stride = 2, 4, 16, 16, 8, 3, 1
    x = jax.random.normal(k1, (N, Cin, H, W), dtype=jnp.float32)
    weight = 0.01 * jax.random.normal(k2, (Cout, Cin, K, K), dtype=jnp.float32)
    conv_bias = jnp.zeros((Cout,), jnp.float32)       # bias.zero_()
    bn_gamma = jnp.ones((Cout,), jnp.float32)         # bn.weight.fill_(1)
    bn_beta = jnp.zeros((Cout,), jnp.float32)         # bn.bias.zero_()
    bn_mean = jnp.zeros((Cout,), jnp.float32)         # running_mean init
    bn_var = jnp.ones((Cout,), jnp.float32)           # running_var init

    ref = conv_ref(x, weight, conv_bias, stride, K // 2)
    ref = (ref - bn_mean.reshape(1, -1, 1, 1)) / jnp.sqrt(bn_var.reshape(1, -1, 1, 1) + 1e-5)
    ref = ref * bn_gamma.reshape(1, -1, 1, 1) + bn_beta.reshape(1, -1, 1, 1)
    ref = jnp.maximum(ref, 0.0)

    out = base_conv_forward(x, weight, conv_bias, bn_gamma, bn_beta, bn_mean, bn_var,
                            stride=stride, use_bn=True, activation="relu",
                            compute_dtype=jnp.float32)
    out = jax.block_until_ready(out)
    assert out.shape == (N, Cout, H, W)
    assert jnp.allclose(out, ref, atol=1e-5, rtol=1e-5), "f32 path mismatch"

    # --- test 2: same layer, default bf16 operands (f32 accumulation) -------
    out_bf16 = base_conv_forward(x, weight, conv_bias, bn_gamma, bn_beta, bn_mean, bn_var,
                                 stride=stride, use_bn=True, activation="relu")
    out_bf16 = jax.block_until_ready(out_bf16)
    assert jnp.allclose(out_bf16, ref, atol=1e-2, rtol=5e-2), "bf16 path mismatch"

    # --- test 3: K-split path (K = 288 > tk), SiLU epilogue, no BN ----------
    N2, Cin2, H2, W2, Cout2 = 2, 32, 8, 8, 16
    x2 = jax.random.normal(k3, (N2, Cin2, H2, W2), dtype=jnp.float32)
    weight2 = 0.01 * jax.random.normal(k4, (Cout2, Cin2, K, K), dtype=jnp.float32)
    bias2 = 0.1 * jnp.ones((Cout2,), jnp.float32)

    ref2 = conv_ref(x2, weight2, bias2, 1, K // 2)
    ref2 = ref2 * jax.nn.sigmoid(ref2)

    out2 = base_conv_forward(x2, weight2, bias2, stride=1, use_bn=False,
                             activation="silu", tk=128)   # force the K-split kernel
    out2 = jax.block_until_ready(out2)
    assert out2.shape == (N2, Cout2, H2, W2)
    assert jnp.allclose(out2, ref2, atol=2e-2, rtol=5e-2), "K-split path mismatch"

    print("KERNEL_OK")
</pallas_src>

<mosaic_0001>
module attributes {stable_mosaic.version = 11 : i64} {
  func.func @_gemm_epilogue_kernel(%arg0: i32, %arg1: i32, %arg2: memref<256x128xf32, #tpu.memory_space<vmem>>, %arg3: memref<128x128xf32, #tpu.memory_space<vmem>>, %arg4: memref<1x128xf32, #tpu.memory_space<vmem>>, %arg5: memref<1x128xf32, #tpu.memory_space<vmem>>, %arg6: memref<256x128xf32, #tpu.memory_space<vmem>>) attributes {dimension_semantics = [#tpu.dimension_semantics<parallel>, #tpu.dimension_semantics<parallel>], iteration_bounds = array<i64: 2, 1>, scalar_prefetch = 0 : i64, scratch_operands = 0 : i64, tpu.core_type = #tpu.core_type<tc>, window_params = [{transform_indices = @transform_0, window_bounds = array<i64: 256, 128>}, {transform_indices = @transform_1, window_bounds = array<i64: 128, 128>}, {transform_indices = @transform_2, window_bounds = array<i64: 1, 128>}, {transform_indices = @transform_3, window_bounds = array<i64: 1, 128>}, {transform_indices = @transform_4, window_bounds = array<i64: 256, 128>}]} {
    %c0 = arith.constant 0 : index
    %c0_0 = arith.constant 0 : index
    %0 = vector.load %arg2[%c0, %c0_0] : memref<256x128xf32, #tpu.memory_space<vmem>>, vector<256x128xf32>
    %c0_1 = arith.constant 0 : index
    %c0_2 = arith.constant 0 : index
    %1 = vector.load %arg3[%c0_1, %c0_2] : memref<128x128xf32, #tpu.memory_space<vmem>>, vector<128x128xf32>
    %cst = arith.constant dense<0.000000e+00> : vector<256x128xf32>
    %2 = tpu.matmul %0, %1, %cst {dimension_numbers = #tpu.dot_dimension_numbers<[1], [0], [0], [1], [0, 0, 1, 1], [], []>} : vector<256x128xf32>, vector<128x128xf32>, vector<256x128xf32> -> vector<256x128xf32>
    %c0_3 = arith.constant 0 : index
    %c0_4 = arith.constant 0 : index
    %3 = vector.load %arg4[%c0_3, %c0_4] : memref<1x128xf32, #tpu.memory_space<vmem>>, vector<1x128xf32>
    %c0_5 = arith.constant 0 : index
    %c0_6 = arith.constant 0 : index
    %4 = vector.load %arg5[%c0_5, %c0_6] : memref<1x128xf32, #tpu.memory_space<vmem>>, vector<1x128xf32>
    %5 = vector.broadcast %3 : vector<1x128xf32> to vector<256x128xf32>
    %6 = arith.mulf %2, %5 : vector<256x128xf32>
    %7 = vector.broadcast %4 : vector<1x128xf32> to vector<256x128xf32>
    %8 = arith.addf %6, %7 : vector<256x128xf32>
    %cst_7 = arith.constant 0.000000e+00 : f32
    %9 = vector.broadcast %cst_7 : f32 to vector<256x128xf32>
    %10 = arith.maximumf %8, %9 : vector<256x128xf32>
    %c0_8 = arith.constant 0 : index
    %c0_9 = arith.constant 0 : index
    %11 = vector.load %arg6[%c0_8, %c0_9] : memref<256x128xf32, #tpu.memory_space<vmem>>, vector<256x128xf32>
    tpu.vector_store %arg6[%c0_8, %c0_9], %10 {strides = array<i32>} : memref<256x128xf32, #tpu.memory_space<vmem>>, vector<256x128xf32>,
    return
  }
  func.func @transform_0(%arg0: i32, %arg1: i32) -> (i32, i32) {
    %c0_i32 = arith.constant 0 : i32
    %c0_i32_0 = arith.constant 0 : i32
    return %arg0, %c0_i32 : i32, i32
  }
  func.func @transform_1(%arg0: i32, %arg1: i32) -> (i32, i32) {
    %c0_i32 = arith.constant 0 : i32
    %c0_i32_0 = arith.constant 0 : i32
    return %c0_i32, %arg1 : i32, i32
  }
  func.func @transform_2(%arg0: i32, %arg1: i32) -> (i32, i32) {
    %c0_i32 = arith.constant 0 : i32
    %c0_i32_0 = arith.constant 0 : i32
    return %c0_i32, %arg1 : i32, i32
  }
  func.func @transform_3(%arg0: i32, %arg1: i32) -> (i32, i32) {
    %c0_i32 = arith.constant 0 : i32
    %c0_i32_0 = arith.constant 0 : i32
    return %c0_i32, %arg1 : i32, i32
  }
  func.func @transform_4(%arg0: i32, %arg1: i32) -> (i32, i32) {
    %c0_i32 = arith.constant 0 : i32
    return %arg0, %arg1 : i32, i32
  }
}

</mosaic_0001>

<llo_original>
// kernel: tpu_custom_call.1
$region0: #{tpu_custom_call.1}
  #allocation0 [shape = 'u32[]', space=smem, size = 0x4, offset = 0x4, fixed_abs, tag = 'smem constant byte address 0x4 - core index']
  #allocation1 [shape = 'u32[144,128]{1,0:T(1,128)}', space=vmem, size = 0x12000, scoped, tag = 'internal scratch']
  %s0 = inlined_call_operand.hbm [shape: f32[512,128], index: 0, kind: input, shape index: {}]
  %s1 = inlined_call_operand.hbm [shape: f32[128,128], index: 1, kind: input, shape index: {}]
  %s2 = inlined_call_operand.vmem [shape: f32[1,128], index: 2, kind: input, shape index: {}]
  %s3 = inlined_call_operand.vmem [shape: f32[1,128], index: 3, kind: input, shape index: {}]
  %s4 = inlined_call_operand.hbm [shape: f32[512,128], index: 4, kind: output, shape index: {}]
  %s5 = sld [smem:[#allocation0]]
  $region57: #{tpu_custom_call.1} parent=0
    _
  %s7 = ssub.s32 1, %s5
  %s8 = scalar_select 0, %s7, %s5
  $region1: #{tpu_custom_call.1} parent=0
    #allocation2 [shape = 'u8[262144]{0}', space=vmem, size = 0x40000, scoped, tag = 'input window, operand 0']
    #allocation3 [shape = 's32[2]{0}', space=sflag, size = 0x8, scoped, tag = 'scoped memory for tpu_custom_call.1']
    #allocation4 [shape = 's32[2]{0}', space=sflag, size = 0x8, scoped, tag = 'scoped memory for tpu_custom_call.1']
    #allocation5 [shape = 'u8[65536]{0}', space=vmem, size = 0x10000, scoped, tag = 'input window, operand 1, single buffered']
    #allocation6 [shape = 's32[1]{0}', space=sflag, size = 0x4, scoped, tag = 'scoped memory for tpu_custom_call.1']
    #allocation7 [shape = 'u8[262144]{0}', space=vmem, size = 0x40000, scoped, tag = 'output window, operand 0']
    %9 = vsyncpa [#allocation3], 0
    %s10 = scalar_lea.sflag [#allocation3], 1
    %11 = vsyncpa %s10, 0
    %12 = vsyncpa [#allocation6], 0
    %13 = vsyncpa [#allocation4], 0
    %s14 = scalar_lea.sflag [#allocation4], 1
    %15 = vsyncpa %s14, 0
    loop: start=0, step=1, limit=4
    $region2: #{tpu_custom_call.1} parent=1 // loop_pre_header
      _
    $region3: #{tpu_custom_call.1} parent=1 // loop_header
      %s17 = sphi 0, %s21
      %p18 = scmp.ge.s32.totalorder %s17, 4
      %s24 = sphi 0, %s36
      %s25 = sphi 0, %s32
      %s26 = sphi 0, %s24
      %s27 = sphi 0, %s25
      %s28 = sphi 0, %s26
      %s29 = sphi 0, %s27
      %s39 = sphi 0, %s41
      %s42 = sphi 0, %s39
      %s43 = sphi 0, %s42
      %s59 = sphi 0, %s43
      %s65 = sphi 0, %s67
      %s68 = sphi 0, %s65
      %s69 = sphi 0, %s68
      %s85 = sphi 0, %s69
      %s91 = sphi 0, %s93
      %s94 = sphi 0, %s91
      %s95 = sphi 0, %s94
      %s111 = sphi 0, %s95
      %s117 = sphi 0, %s119
      %s120 = sphi 0, %s117
      %s121 = sphi 0, %s120
      %s137 = sphi 0, %s121
      %s145 = sphi 0, %s147
      %s148 = sphi 0, %s145
      %s149 = sphi 0, %s148
      %s165 = sphi 0, %s149
    $region4: #{tpu_custom_call.1} parent=1 // loop_header_branch
      %20 = sbr.rel (%p18) target = $region8
    $region5: #{tpu_custom_call.1} parent=1 // loop_body
      %s22 = ssub.s32 %s17, 1
      %s23 = ssub.s32 %s17, 2
      %s30 = sadd.s32 1, %s25
      %p31 = scmp.ge.s32.totalorder %s30, 1
      %s32 = scalar_select %p31, 0, %s30
      %s33 = sadd.s32 1, %s24
      %s34 = scalar_select %p31, %s33, %s24
      %p35 = scmp.ge.s32.totalorder %s34, 2
      %s36 = scalar_select %p35, 0, %s34
      %s37 = ssub.s32 %s24, %s36
      %p38 = scmp.eq.s32.totalorder %s37, 0
      %s40 = sadd.s32 %s39, 1
      %s41 = scalar_select %p38, %s39, %s40
      %p44 = pneg %p38
      %p45 = scmp.eq.s32.totalorder %s17, 1
      %p46 = por %p44, %p45
      %p47 = scmp.ne.s32.totalorder %s39, %s42
      %p48 = scmp.eq.s32.totalorder %s17, 0
      %p49 = por %p47, %p48
      %p50 = scmp.ne.s32.totalorder %s39, %s42
      %p51 = scmp.eq.s32.totalorder %s22, 1
      %p52 = por %p50, %p51
      %p53 = scmp.ne.s32.totalorder %s42, %s43
      %p54 = scmp.eq.s32.totalorder %s22, 0
      %p55 = por %p53, %p54
      %p56 = scmp.ne.s32.totalorder %s42, %s43
      %p57 = scmp.eq.s32.totalorder %s23, 1
      %p58 = por %p56, %p57
      %p60 = scmp.ne.s32.totalorder %s43, %s59
      %p61 = scmp.eq.s32.totalorder %s23, 0
      %p62 = por %p60, %p61
      %s63 = ssub.s32 %s25, %s32
      %p64 = scmp.eq.s32.totalorder %s63, 0
      %s66 = sadd.s32 %s65, 1
      %s67 = scalar_select %p64, %s65, %s66
      %p70 = pneg %p64
      %p71 = scmp.eq.s32.totalorder %s17, 1
      %p72 = por %p70, %p71
      %p73 = scmp.ne.s32.totalorder %s65, %s68
      %p74 = scmp.eq.s32.totalorder %s17, 0
      %p75 = por %p73, %p74
      %p76 = scmp.ne.s32.totalorder %s65, %s68
      %p77 = scmp.eq.s32.totalorder %s22, 1
      %p78 = por %p76, %p77
      %p79 = scmp.ne.s32.totalorder %s68, %s69
      %p80 = scmp.eq.s32.totalorder %s22, 0
      %p81 = por %p79, %p80
      %p82 = scmp.ne.s32.totalorder %s68, %s69
      %p83 = scmp.eq.s32.totalorder %s23, 1
      %p84 = por %p82, %p83
      %p86 = scmp.ne.s32.totalorder %s69, %s85
      %p87 = scmp.eq.s32.totalorder %s23, 0
      %p88 = por %p86, %p87
      %s89 = ssub.s32 %s25, %s32
      %p90 = scmp.eq.s32.totalorder %s89, 0
      %s92 = sadd.s32 %s91, 1
      %s93 = scalar_select %p90, %s91, %s92
      %p96 = pneg %p90
      %p97 = scmp.eq.s32.totalorder %s17, 1
      %p98 = por %p96, %p97
      %p99 = scmp.ne.s32.totalorder %s91, %s94
      %p100 = scmp.eq.s32.totalorder %s17, 0
      %p101 = por %p99, %p100
      %p102 = scmp.ne.s32.totalorder %s91, %s94
      %p103 = scmp.eq.s32.totalorder %s22, 1
      %p104 = por %p102, %p103
      %p105 = scmp.ne.s32.totalorder %s94, %s95
      %p106 = scmp.eq.s32.totalorder %s22, 0
      %p107 = por %p105, %p106
      %p108 = scmp.ne.s32.totalorder %s94, %s95
      %p109 = scmp.eq.s32.totalorder %s23, 1
      %p110 = por %p108, %p109
      %p112 = scmp.ne.s32.totalorder %s95, %s111
      %p113 = scmp.eq.s32.totalorder %s23, 0
      %p114 = por %p112, %p113
      %s115 = ssub.s32 %s25, %s32
      %p116 = scmp.eq.s32.totalorder %s115, 0
      %s118 = sadd.s32 %s117, 1
      %s119 = scalar_select %p116, %s117, %s118
      %p122 = pneg %p116
      %p123 = scmp.eq.s32.totalorder %s17, 1
      %p124 = por %p122, %p123
      %p125 = scmp.ne.s32.totalorder %s117, %s120
      %p126 = scmp.eq.s32.totalorder %s17, 0
      %p127 = por %p125, %p126
      %p128 = scmp.ne.s32.totalorder %s117, %s120
      %p129 = scmp.eq.s32.totalorder %s22, 1
      %p130 = por %p128, %p129
      %p131 = scmp.ne.s32.totalorder %s120, %s121
      %p132 = scmp.eq.s32.totalorder %s22, 0
      %p133 = por %p131, %p132
      %p134 = scmp.ne.s32.totalorder %s120, %s121
      %p135 = scmp.eq.s32.totalorder %s23, 1
      %p136 = por %p134, %p135
      %p138 = scmp.ne.s32.totalorder %s121, %s137
      %p139 = scmp.eq.s32.totalorder %s23, 0
      %p140 = por %p138, %p139
      %s141 = ssub.s32 %s24, %s36
      %s142 = ssub.s32 %s25, %s32
      %s143 = sor.u32 %s141, %s142
      %p144 = scmp.eq.s32.totalorder %s143, 0
      %s146 = sadd.s32 %s145, 1
      %s147 = scalar_select %p144, %s145, %s146
      %p150 = pneg %p144
      %p151 = scmp.eq.s32.totalorder %s17, 1
      %p152 = por %p150, %p151
      %p153 = scmp.ne.s32.totalorder %s145, %s148
      %p154 = scmp.eq.s32.totalorder %s17, 0
      %p155 = por %p153, %p154
      %p156 = scmp.ne.s32.totalorder %s145, %s148
      %p157 = scmp.eq.s32.totalorder %s22, 1
      %p158 = por %p156, %p157
      %p159 = scmp.ne.s32.totalorder %s148, %s149
      %p160 = scmp.eq.s32.totalorder %s22, 0
      %p161 = por %p159, %p160
      %p162 = scmp.ne.s32.totalorder %s148, %s149
      %p163 = scmp.eq.s32.totalorder %s23, 1
      %p164 = por %p162, %p163
      %p166 = scmp.ne.s32.totalorder %s149, %s165
      %p167 = scmp.eq.s32.totalorder %s23, 0
      %p168 = por %p166, %p167
      %p169 = scmp.le.s32.totalorder 1, %s17
      %p170 = scmp.lt.s32.totalorder %s17, 3
      %p171 = pnand %p169, %p170
      %p172 = pneg %p171
      // Predicated region
      $region9: #{tpu_custom_call.1} parent=5 // pred_check
        _
      $region10: #{tpu_custom_call.1} parent=5 // pred_check_branch
        %174 = sbr.rel (%p171) target = $region12
      $region11: #{tpu_custom_call.1} parent=5 // pred_region
        %s175 = ssub.s32 %s17, 1
        // Predicated region
        $region13: #{tpu_custom_call.1} parent=11 // pred_check
          %p176 = pneg %p81
        $region14: #{tpu_custom_call.1} parent=11 // pred_check_branch
          %178 = sbr.rel (%p176) target = $region16
        $region15: #{tpu_custom_call.1} parent=11 // pred_region
          %s180 = ssub.s32 2048, 2048
          %181 = vsyncadd [#allocation6], %s180
          %s182 = smul.addr %s27, 128
          %s183 = scalar_lea.hbm %s1, %s182
          %s184 = sshll.u32 [#allocation5], 4
          %s185 = int_to_ptr.vmem [resolvable:$true] %s184
          %190 = dma.hbm_to_vmem [thread:$0]  %s183, 2048, %s185, [#allocation6], 128, 128, 8
        $region16: #{tpu_custom_call.1} parent=11 // pred_fallthru
          _
        // Predicated region
        $region17: #{tpu_custom_call.1} parent=11 // pred_check
          %p191 = pneg %p107
        $region18: #{tpu_custom_call.1} parent=11 // pred_check_branch
          %193 = sbr.rel (%p191) target = $region20
        $region19: #{tpu_custom_call.1} parent=11 // pred_region
          %p194 = scmp.lt.s32.totalorder %s27, 0
          %s195 = scalar_select %p194, %s27, 0
          %s196 = scalar_lea.vmem %s2, %s195
        $region20: #{tpu_custom_call.1} parent=11 // pred_fallthru
          _
        // Predicated region
        $region21: #{tpu_custom_call.1} parent=11 // pred_check
          %p197 = pneg %p133
        $region22: #{tpu_custom_call.1} parent=11 // pred_check_branch
          %199 = sbr.rel (%p197) target = $region24
        $region23: #{tpu_custom_call.1} parent=11 // pred_region
          %p200 = scmp.lt.s32.totalorder %s27, 0
          %s201 = scalar_select %p200, %s27, 0
          %s202 = scalar_lea.vmem %s3, %s201
        $region24: #{tpu_custom_call.1} parent=11 // pred_fallthru
          _
      $region12: #{tpu_custom_call.1} parent=5 // pred_fallthru
        _
      %p203 = scmp.lt.s32.totalorder %s17, 2
      // Predicated region
      $region25: #{tpu_custom_call.1} parent=5 // pred_check
        %p204 = pneg %p203
      $region26: #{tpu_custom_call.1} parent=5 // pred_check_branch
        %206 = sbr.rel (%p204) target = $region28
      $region27: #{tpu_custom_call.1} parent=5 // pred_region
        // Predicated region
        $region29: #{tpu_custom_call.1} parent=27 // pred_check
          %p207 = pneg %p49
        $region30: #{tpu_custom_call.1} parent=27 // pred_check_branch
          %209 = sbr.rel (%p207) target = $region32
        $region31: #{tpu_custom_call.1} parent=27 // pred_region
          %s210 = sand.u32 %s39, 1
          %s211 = scalar_lea.sflag [#allocation3], %s210
          %s212 = sand.u32 %s39, 1
          %s213 = smul.addr %s212, 256
          %s214 = scalar_lea.vmem [#allocation2], %s213
          %s215 = smul.u32 32, %s24
          %s217 = ssub.s32 4096, 4096
          %218 = vsyncadd %s211, %s217
          %s219 = smul.addr %s215, 128
          %s220 = scalar_lea.hbm %s0, %s219
          %s221 = sshll.u32 %s214, 4
          %s222 = int_to_ptr.vmem [resolvable:$true] %s221
          %227 = dma.hbm_to_vmem [thread:$0]  %s220, 4096, %s222, %s211, 128, 128, 8
        $region32: #{tpu_custom_call.1} parent=27 // pred_fallthru
          _
      $region28: #{tpu_custom_call.1} parent=5 // pred_fallthru
        _
      %p228 = scmp.le.s32.totalorder 1, %s17
      %p229 = scmp.lt.s32.totalorder %s17, 3
      %p230 = pnand %p228, %p229
      %p231 = pneg %p230
      // Predicated region
      $region33: #{tpu_custom_call.1} parent=5 // pred_check
        _
      $region34: #{tpu_custom_call.1} parent=5 // pred_check_branch
        %233 = sbr.rel (%p230) target = $region36
      $region35: #{tpu_custom_call.1} parent=5 // pred_region
        %s234 = ssub.s32 %s17, 1
        %s235 = sand.u32 %s42, 1
        %s236 = scalar_lea.sflag [#allocation3], %s235
        %s237 = sand.u32 %s42, 1
        %s238 = smul.addr %s237, 256
        %s239 = scalar_lea.vmem [#allocation2], %s238
        // Predicated region
        $region37: #{tpu_custom_call.1} parent=35 // pred_check
          %p240 = pneg %p55
        $region38: #{tpu_custom_call.1} parent=35 // pred_check_branch
          %242 = sbr.rel (%p240) target = $region40
        $region39: #{tpu_custom_call.1} parent=35 // pred_region
          %243 = dma.done %s236, 4096
        $region40: #{tpu_custom_call.1} parent=35 // pred_fallthru
          _
        // Predicated region
        $region41: #{tpu_custom_call.1} parent=35 // pred_check
          %p244 = pneg %p81
        $region42: #{tpu_custom_call.1} parent=35 // pred_check_branch
          %246 = sbr.rel (%p244) target = $region44
        $region43: #{tpu_custom_call.1} parent=35 // pred_region
          %247 = dma.done [#allocation6], 2048
        $region44: #{tpu_custom_call.1} parent=35 // pred_fallthru
          _
        %s248 = sand.u32 %s42, 1
        %s249 = scalar_lea.sflag [#allocation3], %s248
        %s250 = sand.u32 %s42, 1
        %s251 = smul.addr %s250, 256
        %s252 = scalar_lea.vmem [#allocation2], %s251
        %p253 = pneg %p55
        %p254 = pneg %p52
        %p255 = pneg %p81
        %p256 = pneg %p78
        %p257 = scmp.lt.s32.totalorder %s27, 0
        %s258 = scalar_select %p257, %s27, 0
        %s259 = scalar_lea.vmem %s2, %s258
        %p260 = pneg %p107
        %p261 = pneg %p104
        %p262 = scmp.lt.s32.totalorder %s27, 0
        %s263 = scalar_select %p262, %s27, 0
        %s264 = scalar_lea.vmem %s3, %s263
        %p265 = pneg %p133
        %p266 = pneg %p130
        %p267 = pneg %p161
        %p268 = pneg %p158
        %s269 = sand.u32 %s148, 1
        %s270 = scalar_lea.sflag [#allocation4], %s269
        %s271 = sand.u32 %s148, 1
        %s272 = smul.addr %s271, 256
        %s273 = scalar_lea.vmem [#allocation7], %s272
        %s274 = smul.u32 32, %s26
        %p275 = scmp.lt.s32.totalorder %s27, 0
        %s276 = scalar_select %p275, %s27, 0
        %s277 = scalar_lea.vmem %s2, %s276
        %p278 = scmp.lt.s32.totalorder %s27, 0
        %s279 = scalar_select %p278, %s27, 0
        %s280 = scalar_lea.vmem %s3, %s279
        %s281 = smul.u32 32, %s26
        %v282 = vld [vmem:[%s239] sm:$0xff]
        %v283 = vld [vmem:[%s239 + $0x8] sm:$0xff]
        %v284 = vld [vmem:[%s239 + $0x10] sm:$0xff]
        %v285 = vld [vmem:[%s239 + $0x18] sm:$0xff]
        %v286 = vld [vmem:[%s239 + $0x20] sm:$0xff]
        %v287 = vld [vmem:[%s239 + $0x28] sm:$0xff]
        %v288 = vld [vmem:[%s239 + $0x30] sm:$0xff]
        %v289 = vld [vmem:[%s239 + $0x38] sm:$0xff]
        %v290 = vld [vmem:[%s239 + $0x40] sm:$0xff]
        %v291 = vld [vmem:[%s239 + $0x48] sm:$0xff]
        %v292 = vld [vmem:[%s239 + $0x50] sm:$0xff]
        %v293 = vld [vmem:[%s239 + $0x58] sm:$0xff]
        %v294 = vld [vmem:[%s239 + $0x60] sm:$0xff]
        %v295 = vld [vmem:[%s239 + $0x68] sm:$0xff]
        %v296 = vld [vmem:[%s239 + $0x70] sm:$0xff]
        %v297 = vld [vmem:[%s239 + $0x78] sm:$0xff]
        %v298 = vld [vmem:[%s239 + $0x80] sm:$0xff]
        %v299 = vld [vmem:[%s239 + $0x88] sm:$0xff]
        %v300 = vld [vmem:[%s239 + $0x90] sm:$0xff]
        %v301 = vld [vmem:[%s239 + $0x98] sm:$0xff]
        %v302 = vld [vmem:[%s239 + $0xa0] sm:$0xff]
        %v303 = vld [vmem:[%s239 + $0xa8] sm:$0xff]
        %v304 = vld [vmem:[%s239 + $0xb0] sm:$0xff]
        %v305 = vld [vmem:[%s239 + $0xb8] sm:$0xff]
        %v306 = vld [vmem:[%s239 + $0xc0] sm:$0xff]
        %v307 = vld [vmem:[%s239 + $0xc8] sm:$0xff]
        %v308 = vld [vmem:[%s239 + $0xd0] sm:$0xff]
        %v309 = vld [vmem:[%s239 + $0xd8] sm:$0xff]
        %v310 = vld [vmem:[%s239 + $0xe0] sm:$0xff]
        %v311 = vld [vmem:[%s239 + $0xe8] sm:$0xff]
        %v312 = vld [vmem:[%s239 + $0xf0] sm:$0xff]
        %v313 = vld [vmem:[%s239 + $0xf8] sm:$0xff]
        %v314 = vld [vmem:[#allocation5] sm:$0xff]
        %v315 = vld [vmem:[#allocation5 + $0x8] sm:$0xff]
        %v316 = vld [vmem:[#allocation5 + $0x10] sm:$0xff]
        %v317 = vld [vmem:[#allocation5 + $0x18] sm:$0xff]
        %v318 = vld [vmem:[#allocation5 + $0x20] sm:$0xff]
        %v319 = vld [vmem:[#allocation5 + $0x28] sm:$0xff]
        %v320 = vld [vmem:[#allocation5 + $0x30] sm:$0xff]
        %v321 = vld [vmem:[#allocation5 + $0x38] sm:$0xff]
        %v322 = vld [vmem:[#allocation5 + $0x40] sm:$0xff]
        %v323 = vld [vmem:[#allocation5 + $0x48] sm:$0xff]
        %v324 = vld [vmem:[#allocation5 + $0x50] sm:$0xff]
        %v325 = vld [vmem:[#allocation5 + $0x58] sm:$0xff]
        %v326 = vld [vmem:[#allocation5 + $0x60] sm:$0xff]
        %v327 = vld [vmem:[#allocation5 + $0x68] sm:$0xff]
        %v328 = vld [vmem:[#allocation5 + $0x70] sm:$0xff]
        %v329 = vld [vmem:[#allocation5 + $0x78] sm:$0xff]
        %330 = vmatprep.subr.mxu0 0.0
        %331 = vmatpush1.msra.mxu0 %v314
        %332 = vmatprep.subr.mxu0 0.0
        %333 = vmatpush1.msra.mxu0 %v315
        %334 = vmatprep.subr.mxu0 0.0
        %335 = vmatpush1.msra.mxu0 %v316
        %336 = vmatprep.subr.mxu0 0.0
        %337 = vmatpush1.msra.mxu0 %v317
        %338 = vmatprep.subr.mxu0 0.0
        %339 = vmatpush1.msra.mxu0 %v318
        %340 = vmatprep.subr.mxu0 0.0
        %341 = vmatpush1.msra.mxu0 %v319
        %342 = vmatprep.subr.mxu0 0.0
        %343 = vmatpush1.msra.mxu0 %v320
        %344 = vmatprep.subr.mxu0 0.0
        %345 = vmatpush1.msra.mxu0 %v321
        %346 = vmatprep.subr.mxu0 0.0
        %347 = vmatpush1.msra.mxu0 %v322
        %348 = vmatprep.subr.mxu0 0.0
        %349 = vmatpush1.msra.mxu0 %v323
        %350 = vmatprep.subr.mxu0 0.0
        %351 = vmatpush1.msra.mxu0 %v324
        %352 = vmatprep.subr.mxu0 0.0
        %353 = vmatpush1.msra.mxu0 %v325
        %354 = vmatprep.subr.mxu0 0.0
        %355 = vmatpush1.msra.mxu0 %v326
        %356 = vmatprep.subr.mxu0 0.0
        %357 = vmatpush1.msra.mxu0 %v327
        %358 = vmatprep.subr.mxu0 0.0
        %359 = vmatpush1.msra.mxu0 %v328
        %360 = vmatprep.subr.mxu0 0.0
        %361 = vmatpush1.msra.mxu0 %v329
        %362 = vmatprep.subr.mxu0 0.0
        %363 = vmatpush1.msra.mxu0 0.0
        %364 = vmatprep.subr.mxu0 0.0
        %365 = vmatpush1.msra.mxu0 0.0
        %366 = vmatprep.subr.mxu0 0.0
        %367 = vmatpush1.msra.mxu0 0.0
        %368 = vmatprep.subr.mxu0 0.0
        %369 = vmatpush1.msra.mxu0 0.0
        %370 = vmatprep.subr.mxu0 0.0
        %371 = vmatpush1.msra.mxu0 0.0
        %372 = vmatprep.subr.mxu0 0.0
        %373 = vmatpush1.msra.mxu0 0.0
        %374 = vmatprep.subr.mxu0 0.0
        %375 = vmatpush1.msra.mxu0 0.0
        %376 = vmatprep.subr.mxu0 0.0
        %377 = vmatpush1.msra.mxu0 0.0
        %378 = vmatprep.subr.mxu0 0.0
        %379 = vmatpush1.msra.mxu0 0.0
        %380 = vmatprep.subr.mxu0 0.0
        %381 = vmatpush1.msra.mxu0 0.0
        %382 = vmatprep.subr.mxu0 0.0
        %383 = vmatpush1.msra.mxu0 0.0
        %384 = vmatprep.subr.mxu0 0.0
        %385 = vmatpush1.msra.mxu0 0.0
        %386 = vmatprep.subr.mxu0 0.0
        %387 = vmatpush1.msra.mxu0 0.0
        %388 = vmatprep.subr.mxu0 0.0
        %389 = vmatpush1.msra.mxu0 0.0
        %390 = vmatprep.subr.mxu0 0.0
        %391 = vmatpush1.msra.mxu0 0.0
        %392 = vmatprep.subr.mxu0 0.0
        %393 = vmatpush1.msra.mxu0 0.0
        %394 = vmatprep.mubr.f32.mxu0 0.0
        %395 = vmatmul.mubr.f32.gmra.mrb[0].mxu0 %v282
        %v396 = vpop.f32.mrb[0].mxu0
        %v397 = vadd.f32 0.0, %v396
        %v398 = vpop.f32.mrb[0].mxu0
        %399 = vmatprep.mubr.f32.mxu0 0.0
        %400 = vmatmul.mubr.f32.gmra.mrb[0].mxu0 %v283
        %v401 = vpop.f32.mrb[0].mxu0
        %v402 = vadd.f32 0.0, %v401
        %v403 = vpop.f32.mrb[0].mxu0
        %404 = vmatprep.mubr.f32.mxu0 0.0
        %405 = vmatmul.mubr.f32.gmra.mrb[0].mxu0 %v284
        %v406 = vpop.f32.mrb[0].mxu0
        %v407 = vadd.f32 0.0, %v406
        %v408 = vpop.f32.mrb[0].mxu0
        %409 = vmatprep.mubr.f32.mxu0 0.0
        %410 = vmatmul.mubr.f32.gmra.mrb[0].mxu0 %v285
        %v411 = vpop.f32.mrb[0].mxu0
        %v412 = vadd.f32 0.0, %v411
        %v413 = vpop.f32.mrb[0].mxu0
        %414 = vmatprep.mubr.f32.mxu0 0.0
        %415 = vmatmul.mubr.f32.gmra.mrb[0].mxu0 %v286
        %v416 = vpop.f32.mrb[0].mxu0
        %v417 = vadd.f32 0.0, %v416
        %v418 = vpop.f32.mrb[0].mxu0
        %419 = vmatprep.mubr.f32.mxu0 0.0
        %420 = vmatmul.mubr.f32.gmra.mrb[0].mxu0 %v287
        %v421 = vpop.f32.mrb[0].mxu0
        %v422 = vadd.f32 0.0, %v421
        %v423 = vpop.f32.mrb[0].mxu0
        %424 = vmatprep.mubr.f32.mxu0 0.0
        %425 = vmatmul.mubr.f32.gmra.mrb[0].mxu0 %v288
        %v426 = vpop.f32.mrb[0].mxu0
        %v427 = vadd.f32 0.0, %v426
        %v428 = vpop.f32.mrb[0].mxu0
        %429 = vmatprep.mubr.f32.mxu0 0.0
        %430 = vmatmul.mubr.f32.gmra.mrb[0].mxu0 %v289
        %v431 = vpop.f32.mrb[0].mxu0
        %v432 = vadd.f32 0.0, %v431
        %v433 = vpop.f32.mrb[0].mxu0
        %434 = vmatprep.mubr.f32.mxu0 0.0
        %435 = vmatmul.mubr.f32.gmra.mrb[0].mxu0 %v290
        %v436 = vpop.f32.mrb[0].mxu0
        %v437 = vadd.f32 0.0, %v436
        %v438 = vpop.f32.mrb[0].mxu0
        %439 = vmatprep.mubr.f32.mxu0 0.0
        %440 = vmatmul.mubr.f32.gmra.mrb[0].mxu0 %v291
        %v441 = vpop.f32.mrb[0].mxu0
        %v442 = vadd.f32 0.0, %v441
        %v443 = vpop.f32.mrb[0].mxu0
        %444 = vmatprep.mubr.f32.mxu0 0.0
        %445 = vmatmul.mubr.f32.gmra.mrb[0].mxu0 %v292
        %v446 = vpop.f32.mrb[0].mxu0
        %v447 = vadd.f32 0.0, %v446
        %v448 = vpop.f32.mrb[0].mxu0
        %449 = vmatprep.mubr.f32.mxu0 0.0
        %450 = vmatmul.mubr.f32.gmra.mrb[0].mxu0 %v293
        %v451 = vpop.f32.mrb[0].mxu0
        %v452 = vadd.f32 0.0, %v451
        %v453 = vpop.f32.mrb[0].mxu0
        %454 = vmatprep.mubr.f32.mxu0 0.0
        %455 = vmatmul.mubr.f32.gmra.mrb[0].mxu0 %v294
        %v456 = vpop.f32.mrb[0].mxu0
        %v457 = vadd.f32 0.0, %v456
        %v458 = vpop.f32.mrb[0].mxu0
        %459 = vmatprep.mubr.f32.mxu0 0.0
        %460 = vmatmul.mubr.f32.gmra.mrb[0].mxu0 %v295
        %v461 = vpop.f32.mrb[0].mxu0
        %v462 = vadd.f32 0.0, %v461
        %v463 = vpop.f32.mrb[0].mxu0
        %464 = vmatprep.mubr.f32.mxu0 0.0
        %465 = vmatmul.mubr.f32.gmra.mrb[0].mxu0 %v296
        %v466 = vpop.f32.mrb[0].mxu0
        %v467 = vadd.f32 0.0, %v466
        %v468 = vpop.f32.mrb[0].mxu0
        %469 = vmatprep.mubr.f32.mxu0 0.0
        %470 = vmatmul.mubr.f32.gmra.mrb[0].mxu0 %v297
        %v471 = vpop.f32.mrb[0].mxu0
        %v472 = vadd.f32 0.0, %v471
        %v473 = vpop.f32.mrb[0].mxu0
        %474 = vmatprep.mubr.f32.mxu0 0.0
        %475 = vmatmul.mubr.f32.gmra.mrb[0].mxu0 %v298
        %v476 = vpop.f32.mrb[0].mxu0
        %v477 = vadd.f32 0.0, %v476
        %v478 = vpop.f32.mrb[0].mxu0
        %479 = vmatprep.mubr.f32.mxu0 0.0
        %480 = vmatmul.mubr.f32.gmra.mrb[0].mxu0 %v299
        %v481 = vpop.f32.mrb[0].mxu0
        %v482 = vadd.f32 0.0, %v481
        %v483 = vpop.f32.mrb[0].mxu0
        %484 = vmatprep.mubr.f32.mxu0 0.0
        %485 = vmatmul.mubr.f32.gmra.mrb[0].mxu0 %v300
        %v486 = vpop.f32.mrb[0].mxu0
        %v487 = vadd.f32 0.0, %v486
        %v488 = vpop.f32.mrb[0].mxu0
        %489 = vmatprep.mubr.f32.mxu0 0.0
        %490 = vmatmul.mubr.f32.gmra.mrb[0].mxu0 %v301
        %v491 = vpop.f32.mrb[0].mxu0
        %v492 = vadd.f32 0.0, %v491
        %v493 = vpop.f32.mrb[0].mxu0
        %494 = vmatprep.mubr.f32.mxu0 0.0
        %495 = vmatmul.mubr.f32.gmra.mrb[0].mxu0 %v302
        %v496 = vpop.f32.mrb[0].mxu0
        %v497 = vadd.f32 0.0, %v496
        %v498 = vpop.f32.mrb[0].mxu0
        %499 = vmatprep.mubr.f32.mxu0 0.0
        %500 = vmatmul.mubr.f32.gmra.mrb[0].mxu0 %v303
        %v501 = vpop.f32.mrb[0].mxu0
        %v502 = vadd.f32 0.0, %v501
        %v503 = vpop.f32.mrb[0].mxu0
        %504 = vmatprep.mubr.f32.mxu0 0.0
        %505 = vmatmul.mubr.f32.gmra.mrb[0].mxu0 %v304
        %v506 = vpop.f32.mrb[0].mxu0
        %v507 = vadd.f32 0.0, %v506
        %v508 = vpop.f32.mrb[0].mxu0
        %509 = vmatprep.mubr.f32.mxu0 0.0
        %510 = vmatmul.mubr.f32.gmra.mrb[0].mxu0 %v305
        %v511 = vpop.f32.mrb[0].mxu0
        %v512 = vadd.f32 0.0, %v511
        %v513 = vpop.f32.mrb[0].mxu0
        %514 = vmatprep.mubr.f32.mxu0 0.0
        %515 = vmatmul.mubr.f32.gmra.mrb[0].mxu0 %v306
        %v516 = vpop.f32.mrb[0].mxu0
        %v517 = vadd.f32 0.0, %v516
        %v518 = vpop.f32.mrb[0].mxu0
        %519 = vmatprep.mubr.f32.mxu0 0.0
        %520 = vmatmul.mubr.f32.gmra.mrb[0].mxu0 %v307
        %v521 = vpop.f32.mrb[0].mxu0
        %v522 = vadd.f32 0.0, %v521
        %v523 = vpop.f32.mrb[0].mxu0
        %524 = vmatprep.mubr.f32.mxu0 0.0
        %525 = vmatmul.mubr.f32.gmra.mrb[0].mxu0 %v308
        %v526 = vpop.f32.mrb[0].mxu0
        %v527 = vadd.f32 0.0, %v526
        %v528 = vpop.f32.mrb[0].mxu0
        %529 = vmatprep.mubr.f32.mxu0 0.0
        %530 = vmatmul.mubr.f32.gmra.mrb[0].mxu0 %v309
        %v531 = vpop.f32.mrb[0].mxu0
        %v532 = vadd.f32 0.0, %v531
        %v533 = vpop.f32.mrb[0].mxu0
        %534 = vmatprep.mubr.f32.mxu0 0.0
        %535 = vmatmul.mubr.f32.gmra.mrb[0].mxu0 %v310
        %v536 = vpop.f32.mrb[0].mxu0
        %v537 = vadd.f32 0.0, %v536
        %v538 = vpop.f32.mrb[0].mxu0
        %539 = vmatprep.mubr.f32.mxu0 0.0
        %540 = vmatmul.mubr.f32.gmra.mrb[0].mxu0 %v311
        %v541 = vpop.f32.mrb[0].mxu0
        %v542 = vadd.f32 0.0, %v541
        %v543 = vpop.f32.mrb[0].mxu0
        %544 = vmatprep.mubr.f32.mxu0 0.0
        %545 = vmatmul.mubr.f32.gmra.mrb[0].mxu0 %v312
        %v546 = vpop.f32.mrb[0].mxu0
        %v547 = vadd.f32 0.0, %v546
        %v548 = vpop.f32.mrb[0].mxu0
        %549 = vmatprep.mubr.f32.mxu0 0.0
        %550 = vmatmul.mubr.f32.gmra.mrb[0].mxu0 %v313
        %v551 = vpop.f32.mrb[0].mxu0
        %v552 = vadd.f32 0.0, %v551
        %v553 = vpop.f32.mrb[0].mxu0
        %554 = vdwg.mxu0
        %v555 = vld [vmem:[%s277] sm:$0x1]
        %v556 = vld [vmem:[%s280] sm:$0x1]
        %v558 = vlaneseq
        %v559 = vshrl.u32 %v558, 7
        %v560 = vsub.s32 0, %v559
        %v561 = vrot.slane %v555, %v560
        %v563 = vmul.f32 %v397, %v561
        %v564 = vmul.f32 %v402, %v561
        %v565 = vmul.f32 %v407, %v561
        %v566 = vmul.f32 %v412, %v561
        %v567 = vmul.f32 %v417, %v561
        %v568 = vmul.f32 %v422, %v561
        %v569 = vmul.f32 %v427, %v561
        %v570 = vmul.f32 %v432, %v561
        %v571 = vmul.f32 %v437, %v561
        %v572 = vmul.f32 %v442, %v561
        %v573 = vmul.f32 %v447, %v561
        %v574 = vmul.f32 %v452, %v561
        %v575 = vmul.f32 %v457, %v561
        %v576 = vmul.f32 %v462, %v561
        %v577 = vmul.f32 %v467, %v561
        %v578 = vmul.f32 %v472, %v561
        %v579 = vmul.f32 %v477, %v561
        %v580 = vmul.f32 %v482, %v561
        %v581 = vmul.f32 %v487, %v561
        %v582 = vmul.f32 %v492, %v561
        %v583 = vmul.f32 %v497, %v561
        %v584 = vmul.f32 %v502, %v561
        %v585 = vmul.f32 %v507, %v561
        %v586 = vmul.f32 %v512, %v561
        %v587 = vmul.f32 %v517, %v561
        %v588 = vmul.f32 %v522, %v561
        %v589 = vmul.f32 %v527, %v561
        %v590 = vmul.f32 %v532, %v561
        %v591 = vmul.f32 %v537, %v561
        %v592 = vmul.f32 %v542, %v561
        %v593 = vmul.f32 %v547, %v561
        %v594 = vmul.f32 %v552, %v561
        %v596 = vlaneseq
        %v597 = vshrl.u32 %v596, 7
        %v598 = vsub.s32 0, %v597
        %v599 = vrot.slane %v556, %v598
        %v601 = vadd.f32 %v563, %v599
        %v602 = vadd.f32 %v564, %v599
        %v603 = vadd.f32 %v565, %v599
        %v604 = vadd.f32 %v566, %v599
        %v605 = vadd.f32 %v567, %v599
        %v606 = vadd.f32 %v568, %v599
        %v607 = vadd.f32 %v569, %v599
        %v608 = vadd.f32 %v570, %v599
        %v609 = vadd.f32 %v571, %v599
        %v610 = vadd.f32 %v572, %v599
        %v611 = vadd.f32 %v573, %v599
        %v612 = vadd.f32 %v574, %v599
        %v613 = vadd.f32 %v575, %v599
        %v614 = vadd.f32 %v576, %v599
        %v615 = vadd.f32 %v577, %v599
        %v616 = vadd.f32 %v578, %v599
        %v617 = vadd.f32 %v579, %v599
        %v618 = vadd.f32 %v580, %v599
        %v619 = vadd.f32 %v581, %v599
        %v620 = vadd.f32 %v582, %v599
        %v621 = vadd.f32 %v583, %v599
        %v622 = vadd.f32 %v584, %v599
        %v623 = vadd.f32 %v585, %v599
        %v624 = vadd.f32 %v586, %v599
        %v625 = vadd.f32 %v587, %v599
        %v626 = vadd.f32 %v588, %v599
        %v627 = vadd.f32 %v589, %v599
        %v628 = vadd.f32 %v590, %v599
        %v629 = vadd.f32 %v591, %v599
        %v630 = vadd.f32 %v592, %v599
        %v631 = vadd.f32 %v593, %v599
        %v632 = vadd.f32 %v594, %v599
        %v633 = vmax.f32 %v601, 0.0
        %v634 = vmax.f32 %v602, 0.0
        %v635 = vmax.f32 %v603, 0.0
        %v636 = vmax.f32 %v604, 0.0
        %v637 = vmax.f32 %v605, 0.0
        %v638 = vmax.f32 %v606, 0.0
        %v639 = vmax.f32 %v607, 0.0
        %v640 = vmax.f32 %v608, 0.0
        %v641 = vmax.f32 %v609, 0.0
        %v642 = vmax.f32 %v610, 0.0
        %v643 = vmax.f32 %v611, 0.0
        %v644 = vmax.f32 %v612, 0.0
        %v645 = vmax.f32 %v613, 0.0
        %v646 = vmax.f32 %v614, 0.0
        %v647 = vmax.f32 %v615, 0.0
        %v648 = vmax.f32 %v616, 0.0
        %v649 = vmax.f32 %v617, 0.0
        %v650 = vmax.f32 %v618, 0.0
        %v651 = vmax.f32 %v619, 0.0
        %v652 = vmax.f32 %v620, 0.0
        %v653 = vmax.f32 %v621, 0.0
        %v654 = vmax.f32 %v622, 0.0
        %v655 = vmax.f32 %v623, 0.0
        %v656 = vmax.f32 %v624, 0.0
        %v657 = vmax.f32 %v625, 0.0
        %v658 = vmax.f32 %v626, 0.0
        %v659 = vmax.f32 %v627, 0.0
        %v660 = vmax.f32 %v628, 0.0
        %v661 = vmax.f32 %v629, 0.0
        %v662 = vmax.f32 %v630, 0.0
        %v663 = vmax.f32 %v631, 0.0
        %v664 = vmax.f32 %v632, 0.0
        %665 = vst [vmem:[%s273] sm:$0xff] %v633
        %666 = vst [vmem:[%s273 + $0x8] sm:$0xff] %v634
        %667 = vst [vmem:[%s273 + $0x10] sm:$0xff] %v635
        %668 = vst [vmem:[%s273 + $0x18] sm:$0xff] %v636
        %669 = vst [vmem:[%s273 + $0x20] sm:$0xff] %v637
        %670 = vst [vmem:[%s273 + $0x28] sm:$0xff] %v638
        %671 = vst [vmem:[%s273 + $0x30] sm:$0xff] %v639
        %672 = vst [vmem:[%s273 + $0x38] sm:$0xff] %v640
        %673 = vst [vmem:[%s273 + $0x40] sm:$0xff] %v641
        %674 = vst [vmem:[%s273 + $0x48] sm:$0xff] %v642
        %675 = vst [vmem:[%s273 + $0x50] sm:$0xff] %v643
        %676 = vst [vmem:[%s273 + $0x58] sm:$0xff] %v644
        %677 = vst [vmem:[%s273 + $0x60] sm:$0xff] %v645
        %678 = vst [vmem:[%s273 + $0x68] sm:$0xff] %v646
        %679 = vst [vmem:[%s273 + $0x70] sm:$0xff] %v647
        %680 = vst [vmem:[%s273 + $0x78] sm:$0xff] %v648
        %681 = vst [vmem:[%s273 + $0x80] sm:$0xff] %v649
        %682 = vst [vmem:[%s273 + $0x88] sm:$0xff] %v650
        %683 = vst [vmem:[%s273 + $0x90] sm:$0xff] %v651
        %684 = vst [vmem:[%s273 + $0x98] sm:$0xff] %v652
        %685 = vst [vmem:[%s273 + $0xa0] sm:$0xff] %v653
        %686 = vst [vmem:[%s273 + $0xa8] sm:$0xff] %v654
        %687 = vst [vmem:[%s273 + $0xb0] sm:$0xff] %v655
        %688 = vst [vmem:[%s273 + $0xb8] sm:$0xff] %v656
        %689 = vst [vmem:[%s273 + $0xc0] sm:$0xff] %v657
        %690 = vst [vmem:[%s273 + $0xc8] sm:$0xff] %v658
        %691 = vst [vmem:[%s273 + $0xd0] sm:$0xff] %v659
        %692 = vst [vmem:[%s273 + $0xd8] sm:$0xff] %v660
        %693 = vst [vmem:[%s273 + $0xe0] sm:$0xff] %v661
        %694 = vst [vmem:[%s273 + $0xe8] sm:$0xff] %v662
        %695 = vst [vmem:[%s273 + $0xf0] sm:$0xff] %v663
        %696 = vst [vmem:[%s273 + $0xf8] sm:$0xff] %v664
        %s697 = sand.u32 %s148, 1
        %s698 = scalar_lea.sflag [#allocation4], %s697
        %s699 = sand.u32 %s148, 1
        %s700 = smul.addr %s699, 256
        %s701 = scalar_lea.vmem [#allocation7], %s700
        // Predicated region
        $region45: #{tpu_custom_call.1} parent=35 // pred_check
          %p702 = pneg %p158
        $region46: #{tpu_custom_call.1} parent=35 // pred_check_branch
          %704 = sbr.rel (%p702) target = $region48
        $region47: #{tpu_custom_call.1} parent=35 // pred_region
          %s705 = smul.u32 32, %s26
          %s707 = ssub.s32 4096, 4096
          %708 = vsyncadd %s698, %s707
          %s709 = sadd.s32 %s27, %s705
          %s710 = smul.addr %s709, 128
          %s711 = scalar_lea.hbm %s4, %s710
          %s712 = sshll.u32 %s701, 4
          %s713 = int_to_ptr.vmem [resolvable:$true] %s712
          %718 = dma.vmem_to_hbm [thread:$0]  %s713, 4096, %s711, %s698, 128, 128, 8
        $region48: #{tpu_custom_call.1} parent=35 // pred_fallthru
          _
      $region36: #{tpu_custom_call.1} parent=5 // pred_fallthru
        _
      %p719 = scmp.le.s32.totalorder 2, %s17
      // Predicated region
      $region49: #{tpu_custom_call.1} parent=5 // pred_check
        %p720 = pneg %p719
      $region50: #{tpu_custom_call.1} parent=5 // pred_check_branch
        %722 = sbr.rel (%p720) target = $region52
      $region51: #{tpu_custom_call.1} parent=5 // pred_region
        %s723 = ssub.s32 %s17, 2
        // Predicated region
        $region53: #{tpu_custom_call.1} parent=51 // pred_check
          %p724 = pneg %p164
        $region54: #{tpu_custom_call.1} parent=51 // pred_check_branch
          %726 = sbr.rel (%p724) target = $region56
        $region55: #{tpu_custom_call.1} parent=51 // pred_region
          %s727 = sand.u32 %s149, 1
          %s728 = scalar_lea.sflag [#allocation4], %s727
          %s729 = sand.u32 %s149, 1
          %s730 = smul.addr %s729, 256
          %s731 = scalar_lea.vmem [#allocation7], %s730
          %732 = dma.done %s728, 4096
        $region56: #{tpu_custom_call.1} parent=51 // pred_fallthru
          _
      $region52: #{tpu_custom_call.1} parent=5 // pred_fallthru
        _
    $region6: #{tpu_custom_call.1} parent=1 // loop_footer
      %s21 = sadd.s32 1, %s17
    $region7: #{tpu_custom_call.1} parent=1 // loop_footer_branch
      %16 = sbr.rel target = $region3
    $region8: #{tpu_custom_call.1} parent=1 // loop_exit
      _
    %733 = vsyncpa [#allocation3], 1
    %s734 = scalar_lea.sflag [#allocation3], 1
    %735 = vsyncpa %s734, 1
    %736 = vsyncpa [#allocation6], 1
    %737 = vsyncpa [#allocation4], 1
    %s738 = scalar_lea.sflag [#allocation4], 1
    %739 = vsyncpa %s738, 1

</llo_original>
